<compile_context>
chip_gen: v7x
topology: tpu7x:2x2x1
jax: 0.10.0
libtpu: 0.0.40
codegen_flags: <defaults>
</compile_context>

<pallas_src>
import functools

import jax
import jax.numpy as jnp
from jax.experimental import pallas as pl
from jax.experimental.pallas import tpu as pltpu


def _round_up(x, m):
    return ((x + m - 1) // m) * m


def _vmem_capacity_bytes():
    """Physical per-core VMEM (128 MiB on v5e/v6e, 64 MiB per TC on v7x); safe fallback."""
    try:
        cap = int(pltpu.get_tpu_info().vmem_capacity_bytes)
        if cap > 0:
            return cap
    except Exception:
        pass
    return 64 * 1024 * 1024  # conservative (v7x per-TensorCore)


def expert_kernel(x_ref, w1_ref, b1_ref, w2_ref, b2_ref, o_ref, acc_ref):
    """grid = (row_tiles, hidden_tiles); the hidden axis is the reduction of the 2nd matmul.

    x_ref:  (tm, Ep)   compute dtype      w1_ref: (Ep, th)  compute dtype   b1_ref: (1, th) f32
    w2_ref: (th, Ep)   compute dtype      b2_ref: (1, Ep)   f32
    o_ref:  (tm, Ep)   output dtype       acc_ref: (tm, Ep) f32 scratch
    """
    k = pl.program_id(1)

    @pl.when(k == 0)
    def _():
        acc_ref[...] = jnp.zeros_like(acc_ref)

    # 1st matmul slice + bias + ReLU. Operands are whatever dtype the wrapper fed (bf16 by
    # default); MXU accumulation and all elementwise math stay f32.
    h = jnp.dot(x_ref[...], w1_ref[...], preferred_element_type=jnp.float32)
    h = jnp.maximum(h + b1_ref[...], 0.0)

    # 2nd matmul: accumulate partial products over hidden slices in the f32 VMEM scratch.
    acc_ref[...] += jnp.dot(h.astype(w2_ref.dtype), w2_ref[...],
                            preferred_element_type=jnp.float32)

    @pl.when(k == pl.num_programs(1) - 1)
    def _():
        # Dropout: identity (eval/inference mode).
        o_ref[...] = (acc_ref[...] + b2_ref[...]).astype(o_ref.dtype)


def pad_and_cast_params(w1, b1, w2, b2, compute_dtype=jnp.bfloat16):
    """Pad weights to 128-aligned (Ep, Hp)/(Hp, Ep) and cast them to the MXU compute dtype.

    Call this ONCE and reuse the result with expert_forward_padded so padded / bf16 weight
    copies are not re-materialised in HBM on every forward call. Biases stay f32 so the bias
    add is done at full precision.
    """
    n_embed, hidden = w1.shape
    Ep = _round_up(n_embed, 128)
    Hp = _round_up(hidden, 128)
    cdt = w1.dtype if compute_dtype is None else compute_dtype

    def pad2(a, rows, cols):
        pr, pc = rows - a.shape[0], cols - a.shape[1]
        return a if (pr == 0 and pc == 0) else jnp.pad(a, ((0, pr), (0, pc)))

    w1p = pad2(w1, Ep, Hp).astype(cdt)
    b1p = pad2(jnp.asarray(b1).reshape(1, -1), 1, Hp).astype(jnp.float32)
    w2p = pad2(w2, Hp, Ep).astype(cdt)
    b2p = pad2(jnp.asarray(b2).reshape(1, -1), 1, Ep).astype(jnp.float32)
    return w1p, b1p, w2p, b2p


def _fits_vmem(tm_e, th_e, Ep, cdt_bytes, out_bytes, budget):
    use = (2 * tm_e * Ep * cdt_bytes        # x tile (double-buffered)
           + 2 * Ep * th_e * cdt_bytes      # W1 slice (double-buffered)
           + 2 * th_e * Ep * cdt_bytes      # W2 slice (double-buffered)
           + 2 * (th_e + Ep) * 4            # biases, f32 (double-buffered)
           + 2 * tm_e * Ep * out_bytes      # output tile (double-buffered)
           + tm_e * Ep * 4                  # f32 accumulator scratch
           + 2 * tm_e * th_e * 4)           # f32 intermediate h + temps
    return use <= budget


def _select_tiles(M, Ep, Hp, cdt_bytes, out_bytes, budget, tm_hint):
    """Pick (tm, th): tm 128-aligned, th a 128-multiple divisor of Hp (prefer th == Hp)."""
    Mp128 = _round_up(max(M, 1), 128)

    def clamp_tm(t):
        return max(128, _round_up(min(t, Mp128), 128))

    def megacore_tm(t):
        # Keep >= 2 row tiles when there is enough work so both v7x TensorCores engage.
        if Mp128 >= 256 and Mp128 // t < 2:
            t = clamp_tm(Mp128 // 2)
        return t

    def pick_th(tm_e):
        # th must divide Hp (both 128-multiples). th == Hp -> weights stay VMEM-resident and
        # are read from HBM exactly once for the whole kernel.
        h128 = Hp // 128
        for nh in range(1, h128 + 1):
            if h128 % nh:
                continue
            th_e = Hp // nh
            if _fits_vmem(tm_e, th_e, Ep, cdt_bytes, out_bytes, budget):
                return th_e
        return 128

    if tm_hint is not None:
        tm_e = clamp_tm(tm_hint)
        return tm_e, pick_th(tm_e)

    tm_e = megacore_tm(clamp_tm(256))
    th_e = pick_th(tm_e)
    if th_e < Hp:
        # Weights can't stay resident -> they get re-streamed once per row tile; raise tm so
        # there are fewer row tiles (higher flops per weight byte) as long as tiles still fit.
        tm_big = megacore_tm(clamp_tm(512))
        if tm_big > tm_e:
            th_big = pick_th(tm_big)
            if _fits_vmem(tm_big, th_big, Ep, cdt_bytes, out_bytes, budget):
                tm_e, th_e = tm_big, th_big
    return tm_e, th_e


@functools.partial(jax.jit, static_argnames=("tm",))
def expert_forward_padded(x, w1p, b1p, w2p, b2p, *, tm=None):
    """x: (..., n_embed) -> (..., n_embed). Weights must come from pad_and_cast_params."""
    orig_shape = x.shape
    n_embed = orig_shape[-1]
    out_dtype = x.dtype
    cdt = w1p.dtype
    Ep, Hp = w1p.shape

    x2d = x.reshape(-1, n_embed)
    M = x2d.shape[0]

    cdt_bytes = jnp.dtype(cdt).itemsize
    out_bytes = jnp.dtype(out_dtype).itemsize

    # Generation-aware VMEM budget: ~108 MiB cap on v5e/v6e, ~54 MiB on v7x.
    cap = _vmem_capacity_bytes()
    budget = int(cap * 0.70)       # tile-selection budget (headroom for Mosaic internal scratch)
    vmem_limit = int(cap * 0.85)

    tm_eff, th_eff = _select_tiles(M, Ep, Hp, cdt_bytes, out_bytes, budget, tm)
    Mp = _round_up(M, tm_eff)
    num_m = Mp // tm_eff
    num_h = Hp // th_eff

    # Activations: cast once in the wrapper (not per-tile in the kernel), lane-dense padding.
    x_p = x2d.astype(cdt)
    if Mp != M or Ep != n_embed:
        x_p = jnp.pad(x_p, ((0, Mp - M), (0, Ep - n_embed)))

    # Advisory cost model.
    flops = 4 * Mp * Ep * Hp                       # two matmuls, 2*M*K*N each
    w_reads = 1 if num_h == 1 else num_m           # weight-resident => single HBM read
    bytes_accessed = (Mp * Ep * (cdt_bytes + out_bytes)
                      + w_reads * 2 * Ep * Hp * cdt_bytes
                      + (Hp + Ep) * 4)
    cost = pl.CostEstimate(flops=int(flops), transcendentals=0,
                           bytes_accessed=int(bytes_accessed))

    out2d = pl.pallas_call(
        expert_kernel,
        out_shape=jax.ShapeDtypeStruct((Mp, Ep), out_dtype),
        grid_spec=pltpu.PrefetchScalarGridSpec(
            num_scalar_prefetch=0,
            grid=(num_m, num_h),
            in_specs=[
                pl.BlockSpec((tm_eff, Ep), lambda i, k: (i, 0)),   # x row tile (const over k)
                pl.BlockSpec((Ep, th_eff), lambda i, k: (0, k)),   # W1 hidden slice
                pl.BlockSpec((1, th_eff), lambda i, k: (0, k)),    # b1 hidden slice (f32)
                pl.BlockSpec((th_eff, Ep), lambda i, k: (k, 0)),   # W2 hidden slice
                pl.BlockSpec((1, Ep), lambda i, k: (0, 0)),        # b2 (f32)
            ],
            out_specs=pl.BlockSpec((tm_eff, Ep), lambda i, k: (i, 0)),
            scratch_shapes=[pltpu.VMEM((tm_eff, Ep), jnp.float32)],
        ),
        compiler_params=pltpu.CompilerParams(
            dimension_semantics=("parallel", "arbitrary"),
            vmem_limit_bytes=vmem_limit,
        ),
        cost_estimate=cost,
    )(x_p, w1p, b1p, w2p, b2p)

    return out2d[:M, :n_embed].reshape(orig_shape)


def expert_forward(x, w1, b1, w2, b2, *, tm=None, compute_dtype=jnp.bfloat16):
    """Convenience path: pads/casts weights on every call. For repeated forwards with fixed
    weights, call pad_and_cast_params once and reuse the result with expert_forward_padded."""
    params = pad_and_cast_params(w1, b1, w2, b2, compute_dtype=compute_dtype)
    return expert_forward_padded(x, *params, tm=tm)


def init_expert_params(key, n_embed, dtype=jnp.float32):
    """Deterministic init mimicking nn.Linear default (uniform +/- 1/sqrt(fan_in))."""
    hidden = 4 * n_embed
    k1, k2, k3, k4 = jax.random.split(key, 4)
    bound1 = 1.0 / (n_embed ** 0.5)
    bound2 = 1.0 / (hidden ** 0.5)
    # stored as [in, out] so the kernel does x @ W directly
    w1 = jax.random.uniform(k1, (n_embed, hidden), dtype, -bound1, bound1)
    b1 = jax.random.uniform(k2, (1, hidden), dtype, -bound1, bound1)
    w2 = jax.random.uniform(k3, (hidden, n_embed), dtype, -bound2, bound2)
    b2 = jax.random.uniform(k4, (1, n_embed), dtype, -bound2, bound2)
    return w1, b1, w2, b2


def _reference(x, w1, b1, w2, b2):
    n_embed = x.shape[-1]
    h = jnp.maximum(x.reshape(-1, n_embed) @ w1 + b1, 0.0)
    return (h @ w2 + b2).reshape(x.shape)  # Dropout in eval mode = identity


if __name__ == "__main__":
    key = jax.random.PRNGKey(0)

    # --- case 1: module-sized demo (batch=2, seq=8, n_embed=32), default bf16 MXU path ---
    n_embed = 32
    batch, seq = 2, 8
    kx, kp, kx2, kp2 = jax.random.split(key, 4)
    x = jax.random.normal(kx, (batch, seq, n_embed), dtype=jnp.float32)
    w1, b1, w2, b2 = init_expert_params(kp, n_embed)
    ref = _reference(x, w1, b1, w2, b2)

    # Pre-pad / pre-cast the weights once (what a real deployment would cache) and reuse.
    params_bf16 = pad_and_cast_params(w1, b1, w2, b2, compute_dtype=jnp.bfloat16)
    out = jax.block_until_ready(expert_forward_padded(x, *params_bf16))
    assert out.shape == x.shape
    assert jnp.allclose(out, ref, atol=5e-2, rtol=5e-2), "mismatch vs reference (bf16 path)"

    # f32-operand path (compute_dtype=None keeps input dtype); MXU may still use bf16 passes
    # for f32 operands depending on default precision, so keep a moderate tolerance.
    out_f32 = jax.block_until_ready(expert_forward(x, w1, b1, w2, b2, compute_dtype=None))
    assert out_f32.shape == x.shape
    assert jnp.allclose(out_f32, ref, atol=2e-2, rtol=2e-2), "mismatch vs reference (f32 path)"

    # --- case 2: ragged row count + non-128 feature dim exercises the padding/tiling path ---
    n_embed2 = 96
    x2 = jax.random.normal(kx2, (3, 5, n_embed2), dtype=jnp.float32)
    p2 = init_expert_params(kp2, n_embed2)
    out2 = jax.block_until_ready(expert_forward(x2, *p2, compute_dtype=None, tm=128))
    ref2 = _reference(x2, *p2)
    assert out2.shape == x2.shape
    assert jnp.allclose(out2, ref2, atol=2e-2, rtol=2e-2), "mismatch vs reference (case 2)"

    print("KERNEL_OK")
</pallas_src>

<mosaic_0001>
module attributes {stable_mosaic.version = 11 : i64} {
  func.func @expert_kernel(%arg0: i32, %arg1: i32, %arg2: memref<128x128xbf16, #tpu.memory_space<vmem>>, %arg3: memref<128x128xbf16, #tpu.memory_space<vmem>>, %arg4: memref<1x128xf32, #tpu.memory_space<vmem>>, %arg5: memref<128x128xbf16, #tpu.memory_space<vmem>>, %arg6: memref<1x128xf32, #tpu.memory_space<vmem>>, %arg7: memref<128x128xf32, #tpu.memory_space<vmem>>, %arg8: memref<128x128xf32, #tpu.memory_space<vmem>>) attributes {dimension_semantics = [#tpu.dimension_semantics<parallel>, #tpu.dimension_semantics<arbitrary>], iteration_bounds = array<i64: 1, 1>, scalar_prefetch = 0 : i64, scratch_operands = 1 : i64, tpu.core_type = #tpu.core_type<tc>, window_params = [{transform_indices = @transform_0, window_bounds = array<i64: 128, 128>}, {transform_indices = @transform_1, window_bounds = array<i64: 128, 128>}, {transform_indices = @transform_2, window_bounds = array<i64: 1, 128>}, {transform_indices = @transform_3, window_bounds = array<i64: 128, 128>}, {pipeline_mode = #tpu.pipeline_mode<synchronous>, transform_indices = @transform_4, window_bounds = array<i64: 1, 128>}, {transform_indices = @transform_5, window_bounds = array<i64: 128, 128>}]} {
    %c0_i32 = arith.constant 0 : i32
    %0 = arith.cmpi eq, %arg1, %c0_i32 : i32
    %1 = arith.extui %0 : i1 to i32
    %c0_i32_0 = arith.constant 0 : i32
    %2 = arith.cmpi ne, %1, %c0_i32_0 : i32
    scf.if %2 {
      %cst_16 = arith.constant 0.000000e+00 : f32
      %20 = vector.broadcast %cst_16 : f32 to vector<128x128xf32>
      %c0_17 = arith.constant 0 : index
      %c0_18 = arith.constant 0 : index
      %21 = vector.load %arg8[%c0_17, %c0_18] : memref<128x128xf32, #tpu.memory_space<vmem>>, vector<128x128xf32>
      tpu.vector_store %arg8[%c0_17, %c0_18], %20 {strides = array<i32>} : memref<128x128xf32, #tpu.memory_space<vmem>>, vector<128x128xf32>,
    } else {
    }
    %c0 = arith.constant 0 : index
    %c0_1 = arith.constant 0 : index
    %3 = vector.load %arg2[%c0, %c0_1] : memref<128x128xbf16, #tpu.memory_space<vmem>>, vector<128x128xbf16>
    %c0_2 = arith.constant 0 : index
    %c0_3 = arith.constant 0 : index
    %4 = vector.load %arg3[%c0_2, %c0_3] : memref<128x128xbf16, #tpu.memory_space<vmem>>, vector<128x128xbf16>
    %cst = arith.constant dense<0.000000e+00> : vector<128x128xf32>
    %5 = tpu.matmul %3, %4, %cst {dimension_numbers = #tpu.dot_dimension_numbers<[1], [0], [0], [1], [0, 0, 1, 1], [], []>} : vector<128x128xbf16>, vector<128x128xbf16>, vector<128x128xf32> -> vector<128x128xf32>
    %c0_4 = arith.constant 0 : index
    %c0_5 = arith.constant 0 : index
    %6 = vector.load %arg4[%c0_4, %c0_5] : memref<1x128xf32, #tpu.memory_space<vmem>>, vector<1x128xf32>
    %7 = vector.broadcast %6 : vector<1x128xf32> to vector<128x128xf32>
    %8 = arith.addf %5, %7 : vector<128x128xf32>
    %cst_6 = arith.constant 0.000000e+00 : f32
    %9 = vector.broadcast %cst_6 : f32 to vector<128x128xf32>
    %10 = arith.maximumf %8, %9 : vector<128x128xf32>
    %c0_7 = arith.constant 0 : index
    %c0_8 = arith.constant 0 : index
    %11 = vector.load %arg8[%c0_7, %c0_8] : memref<128x128xf32, #tpu.memory_space<vmem>>, vector<128x128xf32>
    %12 = arith.truncf %10 : vector<128x128xf32> to vector<128x128xbf16>
    %c0_9 = arith.constant 0 : index
    %c0_10 = arith.constant 0 : index
    %13 = vector.load %arg5[%c0_9, %c0_10] : memref<128x128xbf16, #tpu.memory_space<vmem>>, vector<128x128xbf16>
    %cst_11 = arith.constant dense<0.000000e+00> : vector<128x128xf32>
    %14 = tpu.matmul %12, %13, %cst_11 {dimension_numbers = #tpu.dot_dimension_numbers<[1], [0], [0], [1], [0, 0, 1, 1], [], []>} : vector<128x128xbf16>, vector<128x128xbf16>, vector<128x128xf32> -> vector<128x128xf32>
    %15 = arith.addf %11, %14 : vector<128x128xf32>
    %c0_12 = arith.constant 0 : index
    %c0_13 = arith.constant 0 : index
    %16 = vector.load %arg8[%c0_12, %c0_13] : memref<128x128xf32, #tpu.memory_space<vmem>>, vector<128x128xf32>
    tpu.vector_store %arg8[%c0_12, %c0_13], %15 {strides = array<i32>} : memref<128x128xf32, #tpu.memory_space<vmem>>, vector<128x128xf32>,
    %c0_i32_14 = arith.constant 0 : i32
    %17 = arith.cmpi eq, %arg1, %c0_i32_14 : i32
    %18 = arith.extui %17 : i1 to i32
    %c0_i32_15 = arith.constant 0 : i32
    %19 = arith.cmpi ne, %18, %c0_i32_15 : i32
    scf.if %19 {
      %c0_16 = arith.constant 0 : index
      %c0_17 = arith.constant 0 : index
      %20 = vector.load %arg8[%c0_16, %c0_17] : memref<128x128xf32, #tpu.memory_space<vmem>>, vector<128x128xf32>
      %c0_18 = arith.constant 0 : index
      %c0_19 = arith.constant 0 : index
      %21 = vector.load %arg6[%c0_18, %c0_19] : memref<1x128xf32, #tpu.memory_space<vmem>>, vector<1x128xf32>
      %22 = vector.broadcast %21 : vector<1x128xf32> to vector<128x128xf32>
      %23 = arith.addf %20, %22 : vector<128x128xf32>
      %c0_20 = arith.constant 0 : index
      %c0_21 = arith.constant 0 : index
      %24 = vector.load %arg7[%c0_20, %c0_21] : memref<128x128xf32, #tpu.memory_space<vmem>>, vector<128x128xf32>
      tpu.vector_store %arg7[%c0_20, %c0_21], %23 {strides = array<i32>} : memref<128x128xf32, #tpu.memory_space<vmem>>, vector<128x128xf32>,
    } else {
    }
    return
  }
  func.func @transform_0(%arg0: i32, %arg1: i32) -> (i32, i32) {
    %c0_i32 = arith.constant 0 : i32
    %c0_i32_0 = arith.constant 0 : i32
    return %arg0, %c0_i32 : i32, i32
  }
  func.func @transform_1(%arg0: i32, %arg1: i32) -> (i32, i32) {
    %c0_i32 = arith.constant 0 : i32
    %c0_i32_0 = arith.constant 0 : i32
    return %c0_i32, %arg1 : i32, i32
  }
  func.func @transform_2(%arg0: i32, %arg1: i32) -> (i32, i32) {
    %c0_i32 = arith.constant 0 : i32
    %c0_i32_0 = arith.constant 0 : i32
    return %c0_i32, %arg1 : i32, i32
  }
  func.func @transform_3(%arg0: i32, %arg1: i32) -> (i32, i32) {
    %c0_i32 = arith.constant 0 : i32
    %c0_i32_0 = arith.constant 0 : i32
    return %arg1, %c0_i32 : i32, i32
  }
  func.func @transform_4(%arg0: i32, %arg1: i32) -> (i32, i32) {
    %c0_i32 = arith.constant 0 : i32
    %c0_i32_0 = arith.constant 0 : i32
    %c0_i32_1 = arith.constant 0 : i32
    return %c0_i32, %c0_i32_0 : i32, i32
  }
  func.func @transform_5(%arg0: i32, %arg1: i32) -> (i32, i32) {
    %c0_i32 = arith.constant 0 : i32
    %c0_i32_0 = arith.constant 0 : i32
    return %arg0, %c0_i32 : i32, i32
  }
}

</mosaic_0001>

<llo_original>
// kernel: expert_forward_padded.1
$region0: #{expert_forward_padded.1}
  #allocation0 [shape = 'u32[]', space=smem, size = 0x4, offset = 0x4, fixed_abs, tag = 'smem constant byte address 0x4 - core index']
  #allocation1 [shape = 'u32[144,128]{1,0:T(1,128)}', space=vmem, size = 0x12000, scoped, tag = 'internal scratch']
  #allocation2 [shape = 'f32[128,128]{1,0:T(8,128)}', space=vmem, size = 0x10000, scoped, tag = 'scratch operand']
  %s0 = inlined_call_operand.vmem [shape: bf16[128,128], index: 0, kind: input, shape index: {}]
  %s1 = inlined_call_operand.vmem [shape: bf16[128,128], index: 1, kind: input, shape index: {}]
  %s2 = inlined_call_operand.vmem [shape: f32[1,128], index: 2, kind: input, shape index: {}]
  %s3 = inlined_call_operand.hbm [shape: bf16[128,128], index: 3, kind: input, shape index: {}]
  %s4 = inlined_call_operand.vmem [shape: f32[1,128], index: 4, kind: input, shape index: {}]
  %s5 = inlined_call_operand.vmem [shape: f32[128,128], index: 5, kind: output, shape index: {}]
  %s6 = sld [smem:[#allocation0]]
  $region42: #{expert_forward_padded.1} parent=0
    _
  %s8 = ssub.s32 1, %s6
  %s9 = scalar_select 0, %s8, %s6
  $region1: #{expert_forward_padded.1} parent=0
    #allocation3 [shape = 'u8[32768]{0}', space=vmem, size = 0x8000, scoped, tag = 'input window, operand 3, single buffered']
    #allocation4 [shape = 's32[1]{0}', space=sflag, size = 0x4, scoped, tag = 'scoped memory for expert_forward_padded.1']
    %10 = vsyncpa [#allocation4], 0
    // Predicated region
    $region2: #{expert_forward_padded.1} parent=1 // pred_check
      _
    $region3: #{expert_forward_padded.1} parent=1 // pred_check_branch
      %12 = sbr.rel (0) target = $region5
    $region4: #{expert_forward_padded.1} parent=1 // pred_region
      _
    $region5: #{expert_forward_padded.1} parent=1 // pred_fallthru
      _
    // Predicated region
    $region6: #{expert_forward_padded.1} parent=1 // pred_check
      _
    $region7: #{expert_forward_padded.1} parent=1 // pred_check_branch
      %14 = sbr.rel (0) target = $region9
    $region8: #{expert_forward_padded.1} parent=1 // pred_region
      _
    $region9: #{expert_forward_padded.1} parent=1 // pred_fallthru
      _
    // Predicated region
    $region10: #{expert_forward_padded.1} parent=1 // pred_check
      _
    $region11: #{expert_forward_padded.1} parent=1 // pred_check_branch
      %16 = sbr.rel (0) target = $region13
    $region12: #{expert_forward_padded.1} parent=1 // pred_region
      _
    $region13: #{expert_forward_padded.1} parent=1 // pred_fallthru
      _
    // Predicated region
    $region14: #{expert_forward_padded.1} parent=1 // pred_check
      _
    $region15: #{expert_forward_padded.1} parent=1 // pred_check_branch
      %18 = sbr.rel (0) target = $region17
    $region16: #{expert_forward_padded.1} parent=1 // pred_region
      %s20 = ssub.s32 1024, 1024
      %21 = vsyncadd [#allocation4], %s20
      %s22 = sshll.u32 [#allocation3], 4
      %s23 = int_to_ptr.vmem [resolvable:$true] %s22
      %28 = dma.hbm_to_vmem [thread:$0]  %s3, 1024, %s23, [#allocation4], 64, 64, 4
    $region17: #{expert_forward_padded.1} parent=1 // pred_fallthru
      _
    // Predicated region
    $region18: #{expert_forward_padded.1} parent=1 // pred_check
      _
    $region19: #{expert_forward_padded.1} parent=1 // pred_check_branch
      %30 = sbr.rel (0) target = $region21
    $region20: #{expert_forward_padded.1} parent=1 // pred_region
      _
    $region21: #{expert_forward_padded.1} parent=1 // pred_fallthru
      _
    // Predicated region
    $region22: #{expert_forward_padded.1} parent=1 // pred_check
      _
    $region23: #{expert_forward_padded.1} parent=1 // pred_check_branch
      %32 = sbr.rel (0) target = $region25
    $region24: #{expert_forward_padded.1} parent=1 // pred_region
      %33 = dma.done [#allocation4], 1024
    $region25: #{expert_forward_padded.1} parent=1 // pred_fallthru
      _
    %p35 = scmp.eq.s32.totalorder 0, 0
    // Predicated region
    $region26: #{expert_forward_padded.1} parent=1 // pred_check
      %p36 = pneg %p35
    $region27: #{expert_forward_padded.1} parent=1 // pred_check_branch
      %38 = sbr.rel (%p36) target = $region29
    $region28: #{expert_forward_padded.1} parent=1 // pred_region
      %39 = vst [vmem:[#allocation2] sm:$0xff] 0.0
      %40 = vst [vmem:[#allocation2 + $0x8] sm:$0xff] 0.0
      %41 = vst [vmem:[#allocation2 + $0x10] sm:$0xff] 0.0
      %42 = vst [vmem:[#allocation2 + $0x18] sm:$0xff] 0.0
      %43 = vst [vmem:[#allocation2 + $0x20] sm:$0xff] 0.0
      %44 = vst [vmem:[#allocation2 + $0x28] sm:$0xff] 0.0
      %45 = vst [vmem:[#allocation2 + $0x30] sm:$0xff] 0.0
      %46 = vst [vmem:[#allocation2 + $0x38] sm:$0xff] 0.0
      %47 = vst [vmem:[#allocation2 + $0x40] sm:$0xff] 0.0
      %48 = vst [vmem:[#allocation2 + $0x48] sm:$0xff] 0.0
      %49 = vst [vmem:[#allocation2 + $0x50] sm:$0xff] 0.0
      %50 = vst [vmem:[#allocation2 + $0x58] sm:$0xff] 0.0
      %51 = vst [vmem:[#allocation2 + $0x60] sm:$0xff] 0.0
      %52 = vst [vmem:[#allocation2 + $0x68] sm:$0xff] 0.0
      %53 = vst [vmem:[#allocation2 + $0x70] sm:$0xff] 0.0
      %54 = vst [vmem:[#allocation2 + $0x78] sm:$0xff] 0.0
    $region29: #{expert_forward_padded.1} parent=1 // pred_fallthru
      _
    %v55 = vld [vmem:[%s0] sm:$0xf]
    %v56 = vld [vmem:[%s0 + $0x4] sm:$0xf]
    %v57 = vld [vmem:[%s0 + $0x8] sm:$0xf]
    %v58 = vld [vmem:[%s0 + $0xc] sm:$0xf]
    %v59 = vld [vmem:[%s0 + $0x10] sm:$0xf]
    %v60 = vld [vmem:[%s0 + $0x14] sm:$0xf]
    %v61 = vld [vmem:[%s0 + $0x18] sm:$0xf]
    %v62 = vld [vmem:[%s0 + $0x1c] sm:$0xf]
    %v63 = vld [vmem:[%s0 + $0x20] sm:$0xf]
    %v64 = vld [vmem:[%s0 + $0x24] sm:$0xf]
    %v65 = vld [vmem:[%s0 + $0x28] sm:$0xf]
    %v66 = vld [vmem:[%s0 + $0x2c] sm:$0xf]
    %v67 = vld [vmem:[%s0 + $0x30] sm:$0xf]
    %v68 = vld [vmem:[%s0 + $0x34] sm:$0xf]
    %v69 = vld [vmem:[%s0 + $0x38] sm:$0xf]
    %v70 = vld [vmem:[%s0 + $0x3c] sm:$0xf]
    %v71 = vld [vmem:[%s1] sm:$0xf]
    %v72 = vld [vmem:[%s1 + $0x4] sm:$0xf]
    %v73 = vld [vmem:[%s1 + $0x8] sm:$0xf]
    %v74 = vld [vmem:[%s1 + $0xc] sm:$0xf]
    %v75 = vld [vmem:[%s1 + $0x10] sm:$0xf]
    %v76 = vld [vmem:[%s1 + $0x14] sm:$0xf]
    %v77 = vld [vmem:[%s1 + $0x18] sm:$0xf]
    %v78 = vld [vmem:[%s1 + $0x1c] sm:$0xf]
    %v79 = vld [vmem:[%s1 + $0x20] sm:$0xf]
    %v80 = vld [vmem:[%s1 + $0x24] sm:$0xf]
    %v81 = vld [vmem:[%s1 + $0x28] sm:$0xf]
    %v82 = vld [vmem:[%s1 + $0x2c] sm:$0xf]
    %v83 = vld [vmem:[%s1 + $0x30] sm:$0xf]
    %v84 = vld [vmem:[%s1 + $0x34] sm:$0xf]
    %v85 = vld [vmem:[%s1 + $0x38] sm:$0xf]
    %v86 = vld [vmem:[%s1 + $0x3c] sm:$0xf]
    %v87 = vld [vmem:[%s2] sm:$0x1]
    %v89 = vlaneseq
    %v90 = vshrl.u32 %v89, 7
    %v91 = vsub.s32 0, %v90
    %v92 = vrot.slane %v87, %v91
    %v110 = vunpack.c.l.b16 %v55
    %v111 = vunpack.c.l.b16 %v56
    %v112 = vunpack.c.l.b16 %v57
    %v113 = vunpack.c.l.b16 %v58
    %v114 = vunpack.c.l.b16 %v59
    %v115 = vunpack.c.l.b16 %v60
    %v116 = vunpack.c.l.b16 %v61
    %v117 = vunpack.c.l.b16 %v62
    %v118 = vunpack.c.l.b16 %v63
    %v119 = vunpack.c.l.b16 %v64
    %v120 = vunpack.c.l.b16 %v65
    %v121 = vunpack.c.l.b16 %v66
    %v122 = vunpack.c.l.b16 %v67
    %v123 = vunpack.c.l.b16 %v68
    %v124 = vunpack.c.l.b16 %v69
    %v125 = vunpack.c.l.b16 %v70
    %v126 = vpack.c.b16 %v111, %v110
    %v127 = vpack.c.b16 %v113, %v112
    %v128 = vpack.c.b16 %v115, %v114
    %v129 = vpack.c.b16 %v117, %v116
    %v130 = vpack.c.b16 %v119, %v118
    %v131 = vpack.c.b16 %v121, %v120
    %v132 = vpack.c.b16 %v123, %v122
    %v133 = vpack.c.b16 %v125, %v124
    %v158 = vunpack.c.l.b16 %v71
    %v159 = vunpack.c.l.b16 %v72
    %v160 = vunpack.c.l.b16 %v73
    %v161 = vunpack.c.l.b16 %v74
    %v162 = vunpack.c.l.b16 %v75
    %v163 = vunpack.c.l.b16 %v76
    %v164 = vunpack.c.l.b16 %v77
    %v165 = vunpack.c.l.b16 %v78
    %v166 = vunpack.c.l.b16 %v79
    %v167 = vunpack.c.l.b16 %v80
    %v168 = vunpack.c.l.b16 %v81
    %v169 = vunpack.c.l.b16 %v82
    %v170 = vunpack.c.l.b16 %v83
    %v171 = vunpack.c.l.b16 %v84
    %v172 = vunpack.c.l.b16 %v85
    %v173 = vunpack.c.l.b16 %v86
    %v174 = vpack.c.b16 %v159, %v158
    %v175 = vpack.c.b16 %v161, %v160
    %v176 = vpack.c.b16 %v163, %v162
    %v177 = vpack.c.b16 %v165, %v164
    %v178 = vpack.c.b16 %v167, %v166
    %v179 = vpack.c.b16 %v169, %v168
    %v180 = vpack.c.b16 %v171, %v170
    %v181 = vpack.c.b16 %v173, %v172
    %190 = vmatprep.subr.bf16.mxu0 0
    %191 = vmatpush1.bf16.msra.mxu0 %v174
    %192 = vmatprep.subr.bf16.mxu0 0
    %193 = vmatpush1.bf16.msra.mxu0 %v175
    %194 = vmatprep.subr.bf16.mxu0 0
    %195 = vmatpush1.bf16.msra.mxu0 %v176
    %196 = vmatprep.subr.bf16.mxu0 0
    %197 = vmatpush1.bf16.msra.mxu0 %v177
    %198 = vmatprep.subr.bf16.mxu0 0
    %199 = vmatpush1.bf16.msra.mxu0 %v178
    %200 = vmatprep.subr.bf16.mxu0 0
    %201 = vmatpush1.bf16.msra.mxu0 %v179
    %202 = vmatprep.subr.bf16.mxu0 0
    %203 = vmatpush1.bf16.msra.mxu0 %v180
    %204 = vmatprep.subr.bf16.mxu0 0
    %205 = vmatpush1.bf16.msra.mxu0 %v181
    %206 = vmatprep.subr.bf16.mxu0 0
    %207 = vmatpush1.bf16.msra.mxu0 0
    %208 = vmatprep.subr.bf16.mxu0 0
    %209 = vmatpush1.bf16.msra.mxu0 0
    %210 = vmatprep.subr.bf16.mxu0 0
    %211 = vmatpush1.bf16.msra.mxu0 0
    %212 = vmatprep.subr.bf16.mxu0 0
    %213 = vmatpush1.bf16.msra.mxu0 0
    %214 = vmatprep.subr.bf16.mxu0 0
    %215 = vmatpush1.bf16.msra.mxu0 0
    %216 = vmatprep.subr.bf16.mxu0 0
    %217 = vmatpush1.bf16.msra.mxu0 0
    %218 = vmatprep.subr.bf16.mxu0 0
    %219 = vmatpush1.bf16.msra.mxu0 0
    %220 = vmatprep.subr.bf16.mxu0 0
    %221 = vmatpush1.bf16.msra.mxu0 0
    %222 = vmatprep.mubr.bf16.mxu0 0
    %223 = vmatmul.mubr.bf16.gmra.mrb[0].mxu0 %v126
    %v224 = vpop.f32.mrb[0].mxu0
    %v225 = vadd.f32 %v92, %v224
    %v226 = vpop.f32.mrb[0].mxu0
    %v227 = vpop.f32.mrb[0].mxu0
    %v228 = vadd.f32 %v92, %v227
    %v229 = vpop.f32.mrb[0].mxu0
    %230 = vmatprep.mubr.bf16.mxu0 0
    %231 = vmatmul.mubr.bf16.gmra.mrb[0].mxu0 %v127
    %v232 = vpop.f32.mrb[0].mxu0
    %v233 = vadd.f32 %v92, %v232
    %v234 = vpop.f32.mrb[0].mxu0
    %v235 = vpop.f32.mrb[0].mxu0
    %v236 = vadd.f32 %v92, %v235
    %v237 = vpop.f32.mrb[0].mxu0
    %238 = vmatprep.mubr.bf16.mxu0 0
    %239 = vmatmul.mubr.bf16.gmra.mrb[0].mxu0 %v128
    %v240 = vpop.f32.mrb[0].mxu0
    %v241 = vadd.f32 %v92, %v240
    %v242 = vpop.f32.mrb[0].mxu0
    %v243 = vpop.f32.mrb[0].mxu0
    %v244 = vadd.f32 %v92, %v243
    %v245 = vpop.f32.mrb[0].mxu0
    %246 = vmatprep.mubr.bf16.mxu0 0
    %247 = vmatmul.mubr.bf16.gmra.mrb[0].mxu0 %v129
    %v248 = vpop.f32.mrb[0].mxu0
    %v249 = vadd.f32 %v92, %v248
    %v250 = vpop.f32.mrb[0].mxu0
    %v251 = vpop.f32.mrb[0].mxu0
    %v252 = vadd.f32 %v92, %v251
    %v253 = vpop.f32.mrb[0].mxu0
    %254 = vmatprep.mubr.bf16.mxu0 0
    %255 = vmatmul.mubr.bf16.gmra.mrb[0].mxu0 %v130
    %v256 = vpop.f32.mrb[0].mxu0
    %v257 = vadd.f32 %v92, %v256
    %v258 = vpop.f32.mrb[0].mxu0
    %v259 = vpop.f32.mrb[0].mxu0
    %v260 = vadd.f32 %v92, %v259
    %v261 = vpop.f32.mrb[0].mxu0
    %262 = vmatprep.mubr.bf16.mxu0 0
    %263 = vmatmul.mubr.bf16.gmra.mrb[0].mxu0 %v131
    %v264 = vpop.f32.mrb[0].mxu0
    %v265 = vadd.f32 %v92, %v264
    %v266 = vpop.f32.mrb[0].mxu0
    %v267 = vpop.f32.mrb[0].mxu0
    %v268 = vadd.f32 %v92, %v267
    %v269 = vpop.f32.mrb[0].mxu0
    %270 = vmatprep.mubr.bf16.mxu0 0
    %271 = vmatmul.mubr.bf16.gmra.mrb[0].mxu0 %v132
    %v272 = vpop.f32.mrb[0].mxu0
    %v273 = vadd.f32 %v92, %v272
    %v274 = vpop.f32.mrb[0].mxu0
    %v275 = vpop.f32.mrb[0].mxu0
    %v276 = vadd.f32 %v92, %v275
    %v277 = vpop.f32.mrb[0].mxu0
    %278 = vmatprep.mubr.bf16.mxu0 0
    %279 = vmatmul.mubr.bf16.gmra.mrb[0].mxu0 %v133
    %v280 = vpop.f32.mrb[0].mxu0
    %v281 = vadd.f32 %v92, %v280
    %v282 = vpop.f32.mrb[0].mxu0
    %v283 = vpop.f32.mrb[0].mxu0
    %v284 = vadd.f32 %v92, %v283
    %v285 = vpop.f32.mrb[0].mxu0
    %286 = vdwg.mxu0
    %v287 = vmax.f32 %v225, 0.0
    %v288 = vmax.f32 %v228, 0.0
    %v289 = vmax.f32 %v233, 0.0
    %v290 = vmax.f32 %v236, 0.0
    %v291 = vmax.f32 %v241, 0.0
    %v292 = vmax.f32 %v244, 0.0
    %v293 = vmax.f32 %v249, 0.0
    %v294 = vmax.f32 %v252, 0.0
    %v295 = vmax.f32 %v257, 0.0
    %v296 = vmax.f32 %v260, 0.0
    %v297 = vmax.f32 %v265, 0.0
    %v298 = vmax.f32 %v268, 0.0
    %v299 = vmax.f32 %v273, 0.0
    %v300 = vmax.f32 %v276, 0.0
    %v301 = vmax.f32 %v281, 0.0
    %v302 = vmax.f32 %v284, 0.0
    %v303 = vld [vmem:[#allocation2] sm:$0xff]
    %v304 = vld [vmem:[#allocation2 + $0x8] sm:$0xff]
    %v305 = vld [vmem:[#allocation2 + $0x10] sm:$0xff]
    %v306 = vld [vmem:[#allocation2 + $0x18] sm:$0xff]
    %v307 = vld [vmem:[#allocation2 + $0x20] sm:$0xff]
    %v308 = vld [vmem:[#allocation2 + $0x28] sm:$0xff]
    %v309 = vld [vmem:[#allocation2 + $0x30] sm:$0xff]
    %v310 = vld [vmem:[#allocation2 + $0x38] sm:$0xff]
    %v311 = vld [vmem:[#allocation2 + $0x40] sm:$0xff]
    %v312 = vld [vmem:[#allocation2 + $0x48] sm:$0xff]
    %v313 = vld [vmem:[#allocation2 + $0x50] sm:$0xff]
    %v314 = vld [vmem:[#allocation2 + $0x58] sm:$0xff]
    %v315 = vld [vmem:[#allocation2 + $0x60] sm:$0xff]
    %v316 = vld [vmem:[#allocation2 + $0x68] sm:$0xff]
    %v317 = vld [vmem:[#allocation2 + $0x70] sm:$0xff]
    %v318 = vld [vmem:[#allocation2 + $0x78] sm:$0xff]
    %v319 = vpack.c.bf16 %v288, %v287
    %v320 = vpack.c.bf16 %v290, %v289
    %v321 = vpack.c.bf16 %v292, %v291
    %v322 = vpack.c.bf16 %v294, %v293
    %v323 = vpack.c.bf16 %v296, %v295
    %v324 = vpack.c.bf16 %v298, %v297
    %v325 = vpack.c.bf16 %v300, %v299
    %v326 = vpack.c.bf16 %v302, %v301
    %v327 = vld [vmem:[#allocation3] sm:$0xf]
    %v328 = vld [vmem:[#allocation3 + $0x4] sm:$0xf]
    %v329 = vld [vmem:[#allocation3 + $0x8] sm:$0xf]
    %v330 = vld [vmem:[#allocation3 + $0xc] sm:$0xf]
    %v331 = vld [vmem:[#allocation3 + $0x10] sm:$0xf]
    %v332 = vld [vmem:[#allocation3 + $0x14] sm:$0xf]
    %v333 = vld [vmem:[#allocation3 + $0x18] sm:$0xf]
    %v334 = vld [vmem:[#allocation3 + $0x1c] sm:$0xf]
    %v335 = vld [vmem:[#allocation3 + $0x20] sm:$0xf]
    %v336 = vld [vmem:[#allocation3 + $0x24] sm:$0xf]
    %v337 = vld [vmem:[#allocation3 + $0x28] sm:$0xf]
    %v338 = vld [vmem:[#allocation3 + $0x2c] sm:$0xf]
    %v339 = vld [vmem:[#allocation3 + $0x30] sm:$0xf]
    %v340 = vld [vmem:[#allocation3 + $0x34] sm:$0xf]
    %v341 = vld [vmem:[#allocation3 + $0x38] sm:$0xf]
    %v342 = vld [vmem:[#allocation3 + $0x3c] sm:$0xf]
    %v359 = vunpack.c.l.b16 %v327
    %v360 = vunpack.c.l.b16 %v328
    %v361 = vunpack.c.l.b16 %v329
    %v362 = vunpack.c.l.b16 %v330
    %v363 = vunpack.c.l.b16 %v331
    %v364 = vunpack.c.l.b16 %v332
    %v365 = vunpack.c.l.b16 %v333
    %v366 = vunpack.c.l.b16 %v334
    %v367 = vunpack.c.l.b16 %v335
    %v368 = vunpack.c.l.b16 %v336
    %v369 = vunpack.c.l.b16 %v337
    %v370 = vunpack.c.l.b16 %v338
    %v371 = vunpack.c.l.b16 %v339
    %v372 = vunpack.c.l.b16 %v340
    %v373 = vunpack.c.l.b16 %v341
    %v374 = vunpack.c.l.b16 %v342
    %v375 = vpack.c.b16 %v360, %v359
    %v376 = vpack.c.b16 %v362, %v361
    %v377 = vpack.c.b16 %v364, %v363
    %v378 = vpack.c.b16 %v366, %v365
    %v379 = vpack.c.b16 %v368, %v367
    %v380 = vpack.c.b16 %v370, %v369
    %v381 = vpack.c.b16 %v372, %v371
    %v382 = vpack.c.b16 %v374, %v373
    %391 = vmatprep.subr.bf16.mxu0 0
    %392 = vmatpush1.bf16.msra.mxu0 %v375
    %393 = vmatprep.subr.bf16.mxu0 0
    %394 = vmatpush1.bf16.msra.mxu0 %v376
    %395 = vmatprep.subr.bf16.mxu0 0
    %396 = vmatpush1.bf16.msra.mxu0 %v377
    %397 = vmatprep.subr.bf16.mxu0 0
    %398 = vmatpush1.bf16.msra.mxu0 %v378
    %399 = vmatprep.subr.bf16.mxu0 0
    %400 = vmatpush1.bf16.msra.mxu0 %v379
    %401 = vmatprep.subr.bf16.mxu0 0
    %402 = vmatpush1.bf16.msra.mxu0 %v380
    %403 = vmatprep.subr.bf16.mxu0 0
    %404 = vmatpush1.bf16.msra.mxu0 %v381
    %405 = vmatprep.subr.bf16.mxu0 0
    %406 = vmatpush1.bf16.msra.mxu0 %v382
    %407 = vmatprep.subr.bf16.mxu0 0
    %408 = vmatpush1.bf16.msra.mxu0 0
    %409 = vmatprep.subr.bf16.mxu0 0
    %410 = vmatpush1.bf16.msra.mxu0 0
    %411 = vmatprep.subr.bf16.mxu0 0
    %412 = vmatpush1.bf16.msra.mxu0 0
    %413 = vmatprep.subr.bf16.mxu0 0
    %414 = vmatpush1.bf16.msra.mxu0 0
    %415 = vmatprep.subr.bf16.mxu0 0
    %416 = vmatpush1.bf16.msra.mxu0 0
    %417 = vmatprep.subr.bf16.mxu0 0
    %418 = vmatpush1.bf16.msra.mxu0 0
    %419 = vmatprep.subr.bf16.mxu0 0
    %420 = vmatpush1.bf16.msra.mxu0 0
    %421 = vmatprep.subr.bf16.mxu0 0
    %422 = vmatpush1.bf16.msra.mxu0 0
    %423 = vmatprep.mubr.bf16.mxu0 0
    %424 = vmatmul.mubr.bf16.gmra.mrb[0].mxu0 %v319
    %v425 = vpop.f32.mrb[0].mxu0
    %v426 = vadd.f32 0.0, %v425
    %v427 = vpop.f32.mrb[0].mxu0
    %v428 = vpop.f32.mrb[0].mxu0
    %v429 = vadd.f32 0.0, %v428
    %v430 = vpop.f32.mrb[0].mxu0
    %431 = vmatprep.mubr.bf16.mxu0 0
    %432 = vmatmul.mubr.bf16.gmra.mrb[0].mxu0 %v320
    %v433 = vpop.f32.mrb[0].mxu0
    %v434 = vadd.f32 0.0, %v433
    %v435 = vpop.f32.mrb[0].mxu0
    %v436 = vpop.f32.mrb[0].mxu0
    %v437 = vadd.f32 0.0, %v436
    %v438 = vpop.f32.mrb[0].mxu0
    %439 = vmatprep.mubr.bf16.mxu0 0
    %440 = vmatmul.mubr.bf16.gmra.mrb[0].mxu0 %v321
    %v441 = vpop.f32.mrb[0].mxu0
    %v442 = vadd.f32 0.0, %v441
    %v443 = vpop.f32.mrb[0].mxu0
    %v444 = vpop.f32.mrb[0].mxu0
    %v445 = vadd.f32 0.0, %v444
    %v446 = vpop.f32.mrb[0].mxu0
    %447 = vmatprep.mubr.bf16.mxu0 0
    %448 = vmatmul.mubr.bf16.gmra.mrb[0].mxu0 %v322
    %v449 = vpop.f32.mrb[0].mxu0
    %v450 = vadd.f32 0.0, %v449
    %v451 = vpop.f32.mrb[0].mxu0
    %v452 = vpop.f32.mrb[0].mxu0
    %v453 = vadd.f32 0.0, %v452
    %v454 = vpop.f32.mrb[0].mxu0
    %455 = vmatprep.mubr.bf16.mxu0 0
    %456 = vmatmul.mubr.bf16.gmra.mrb[0].mxu0 %v323
    %v457 = vpop.f32.mrb[0].mxu0
    %v458 = vadd.f32 0.0, %v457
    %v459 = vpop.f32.mrb[0].mxu0
    %v460 = vpop.f32.mrb[0].mxu0
    %v461 = vadd.f32 0.0, %v460
    %v462 = vpop.f32.mrb[0].mxu0
    %463 = vmatprep.mubr.bf16.mxu0 0
    %464 = vmatmul.mubr.bf16.gmra.mrb[0].mxu0 %v324
    %v465 = vpop.f32.mrb[0].mxu0
    %v466 = vadd.f32 0.0, %v465
    %v467 = vpop.f32.mrb[0].mxu0
    %v468 = vpop.f32.mrb[0].mxu0
    %v469 = vadd.f32 0.0, %v468
    %v470 = vpop.f32.mrb[0].mxu0
    %471 = vmatprep.mubr.bf16.mxu0 0
    %472 = vmatmul.mubr.bf16.gmra.mrb[0].mxu0 %v325
    %v473 = vpop.f32.mrb[0].mxu0
    %v474 = vadd.f32 0.0, %v473
    %v475 = vpop.f32.mrb[0].mxu0
    %v476 = vpop.f32.mrb[0].mxu0
    %v477 = vadd.f32 0.0, %v476
    %v478 = vpop.f32.mrb[0].mxu0
    %479 = vmatprep.mubr.bf16.mxu0 0
    %480 = vmatmul.mubr.bf16.gmra.mrb[0].mxu0 %v326
    %v481 = vpop.f32.mrb[0].mxu0
    %v482 = vadd.f32 0.0, %v481
    %v483 = vpop.f32.mrb[0].mxu0
    %v484 = vpop.f32.mrb[0].mxu0
    %v485 = vadd.f32 0.0, %v484
    %v486 = vpop.f32.mrb[0].mxu0
    %487 = vdwg.mxu0
    %v488 = vadd.f32 %v303, %v426
    %v489 = vadd.f32 %v304, %v429
    %v490 = vadd.f32 %v305, %v434
    %v491 = vadd.f32 %v306, %v437
    %v492 = vadd.f32 %v307, %v442
    %v493 = vadd.f32 %v308, %v445
    %v494 = vadd.f32 %v309, %v450
    %v495 = vadd.f32 %v310, %v453
    %v496 = vadd.f32 %v311, %v458
    %v497 = vadd.f32 %v312, %v461
    %v498 = vadd.f32 %v313, %v466
    %v499 = vadd.f32 %v314, %v469
    %v500 = vadd.f32 %v315, %v474
    %v501 = vadd.f32 %v316, %v477
    %v502 = vadd.f32 %v317, %v482
    %v503 = vadd.f32 %v318, %v485
    %504 = vst [vmem:[#allocation2] sm:$0xff] %v488
    %505 = vst [vmem:[#allocation2 + $0x8] sm:$0xff] %v489
    %506 = vst [vmem:[#allocation2 + $0x10] sm:$0xff] %v490
    %507 = vst [vmem:[#allocation2 + $0x18] sm:$0xff] %v491
    %508 = vst [vmem:[#allocation2 + $0x20] sm:$0xff] %v492
    %509 = vst [vmem:[#allocation2 + $0x28] sm:$0xff] %v493
    %510 = vst [vmem:[#allocation2 + $0x30] sm:$0xff] %v494
    %511 = vst [vmem:[#allocation2 + $0x38] sm:$0xff] %v495
    %512 = vst [vmem:[#allocation2 + $0x40] sm:$0xff] %v496
    %513 = vst [vmem:[#allocation2 + $0x48] sm:$0xff] %v497
    %514 = vst [vmem:[#allocation2 + $0x50] sm:$0xff] %v498
    %515 = vst [vmem:[#allocation2 + $0x58] sm:$0xff] %v499
    %516 = vst [vmem:[#allocation2 + $0x60] sm:$0xff] %v500
    %517 = vst [vmem:[#allocation2 + $0x68] sm:$0xff] %v501
    %518 = vst [vmem:[#allocation2 + $0x70] sm:$0xff] %v502
    %519 = vst [vmem:[#allocation2 + $0x78] sm:$0xff] %v503
    // Predicated region
    $region30: #{expert_forward_padded.1} parent=1 // pred_check
      %p520 = pneg %p35
    $region31: #{expert_forward_padded.1} parent=1 // pred_check_branch
      %522 = sbr.rel (%p520) target = $region33
    $region32: #{expert_forward_padded.1} parent=1 // pred_region
      %v523 = vld [vmem:[#allocation2] sm:$0xff]
      %v524 = vld [vmem:[#allocation2 + $0x8] sm:$0xff]
      %v525 = vld [vmem:[#allocation2 + $0x10] sm:$0xff]
      %v526 = vld [vmem:[#allocation2 + $0x18] sm:$0xff]
      %v527 = vld [vmem:[#allocation2 + $0x20] sm:$0xff]
      %v528 = vld [vmem:[#allocation2 + $0x28] sm:$0xff]
      %v529 = vld [vmem:[#allocation2 + $0x30] sm:$0xff]
      %v530 = vld [vmem:[#allocation2 + $0x38] sm:$0xff]
      %v531 = vld [vmem:[#allocation2 + $0x40] sm:$0xff]
      %v532 = vld [vmem:[#allocation2 + $0x48] sm:$0xff]
      %v533 = vld [vmem:[#allocation2 + $0x50] sm:$0xff]
      %v534 = vld [vmem:[#allocation2 + $0x58] sm:$0xff]
      %v535 = vld [vmem:[#allocation2 + $0x60] sm:$0xff]
      %v536 = vld [vmem:[#allocation2 + $0x68] sm:$0xff]
      %v537 = vld [vmem:[#allocation2 + $0x70] sm:$0xff]
      %v538 = vld [vmem:[#allocation2 + $0x78] sm:$0xff]
      %v539 = vld [vmem:[%s4] sm:$0x1]
      %v541 = vlaneseq
      %v542 = vshrl.u32 %v541, 7
      %v543 = vsub.s32 0, %v542
      %v544 = vrot.slane %v539, %v543
      %v546 = vadd.f32 %v523, %v544
      %v547 = vadd.f32 %v524, %v544
      %v548 = vadd.f32 %v525, %v544
      %v549 = vadd.f32 %v526, %v544
      %v550 = vadd.f32 %v527, %v544
      %v551 = vadd.f32 %v528, %v544
      %v552 = vadd.f32 %v529, %v544
      %v553 = vadd.f32 %v530, %v544
      %v554 = vadd.f32 %v531, %v544
      %v555 = vadd.f32 %v532, %v544
      %v556 = vadd.f32 %v533, %v544
      %v557 = vadd.f32 %v534, %v544
      %v558 = vadd.f32 %v535, %v544
      %v559 = vadd.f32 %v536, %v544
      %v560 = vadd.f32 %v537, %v544
      %v561 = vadd.f32 %v538, %v544
      %562 = vst [vmem:[%s5] sm:$0xff] %v546
      %563 = vst [vmem:[%s5 + $0x8] sm:$0xff] %v547
      %564 = vst [vmem:[%s5 + $0x10] sm:$0xff] %v548
      %565 = vst [vmem:[%s5 + $0x18] sm:$0xff] %v549
      %566 = vst [vmem:[%s5 + $0x20] sm:$0xff] %v550
      %567 = vst [vmem:[%s5 + $0x28] sm:$0xff] %v551
      %568 = vst [vmem:[%s5 + $0x30] sm:$0xff] %v552
      %569 = vst [vmem:[%s5 + $0x38] sm:$0xff] %v553
      %570 = vst [vmem:[%s5 + $0x40] sm:$0xff] %v554
      %571 = vst [vmem:[%s5 + $0x48] sm:$0xff] %v555
      %572 = vst [vmem:[%s5 + $0x50] sm:$0xff] %v556
      %573 = vst [vmem:[%s5 + $0x58] sm:$0xff] %v557
      %574 = vst [vmem:[%s5 + $0x60] sm:$0xff] %v558
      %575 = vst [vmem:[%s5 + $0x68] sm:$0xff] %v559
      %576 = vst [vmem:[%s5 + $0x70] sm:$0xff] %v560
      %577 = vst [vmem:[%s5 + $0x78] sm:$0xff] %v561
    $region33: #{expert_forward_padded.1} parent=1 // pred_fallthru
      _
    // Predicated region
    $region34: #{expert_forward_padded.1} parent=1 // pred_check
      _
    $region35: #{expert_forward_padded.1} parent=1 // pred_check_branch
      %579 = sbr.rel (0) target = $region37
    $region36: #{expert_forward_padded.1} parent=1 // pred_region
      _
    $region37: #{expert_forward_padded.1} parent=1 // pred_fallthru
      _
    // Predicated region
    $region38: #{expert_forward_padded.1} parent=1 // pred_check
      _
    $region39: #{expert_forward_padded.1} parent=1 // pred_check_branch
      %581 = sbr.rel (0) target = $region41
    $region40: #{expert_forward_padded.1} parent=1 // pred_region
      _
    $region41: #{expert_forward_padded.1} parent=1 // pred_fallthru
      _
    %582 = vsyncpa [#allocation4], 1

</llo_original>
